<compile_context>
chip_gen: v7x
topology: tpu7x:2x2x1
jax: 0.10.0
libtpu: 0.0.40
codegen_flags: <defaults>
</compile_context>

<pallas_src>
import functools

import jax
import jax.numpy as jnp
from jax import lax
from jax.experimental import pallas as pl
from jax.experimental.pallas import tpu as pltpu

LANES = 128
SUBLANES = 8
# Plain-JAX fast path for inputs below this many bytes (both operands combined):
# fixed pallas_call / pipeline startup cost dominates for tiny tensors.
FAST_PATH_BYTES = 1 << 20  # 1 MiB


def _round_up(x, m):
    return ((x + m - 1) // m) * m


def _chip_config():
    """Generation-aware tile / VMEM knobs (conservative defaults if unknown)."""
    kind = ""
    try:
        kind = jax.devices()[0].device_kind.lower()
    except Exception:
        pass
    if "v7" in kind:
        # ~3.2 TB/s HBM per TC, 64 MiB VMEM/TC (32 MiB default scoped), 2 TCs.
        return dict(block_bytes=4 << 20, vmem_limit=40 << 20, num_cores=2)
    if "v6" in kind:
        # ~1.4 TB/s HBM, 128 MiB VMEM (32 MiB default scoped), 1 TC.
        return dict(block_bytes=4 << 20, vmem_limit=64 << 20, num_cores=1)
    # v5e / unknown: ~0.82 TB/s HBM, 16 MiB default scoped VMEM, 1 TC.
    return dict(block_bytes=2 << 20, vmem_limit=None, num_cores=1)


def _rmse_partial_kernel(pred_ref, actual_ref, out_ref, *,
                         tiles_per_split, row_tile, valid_rows, needs_mask):
    c = pl.program_id(0)          # split axis (core-parallel on v7x)
    t = pl.program_id(1)          # row-tile (reduction) axis

    @pl.when(t == 0)
    def _():
        out_ref[...] = jnp.zeros_like(out_ref)

    # (pred + 1) - (actual + 1) == pred - actual  (offsets cancel exactly).
    d = pred_ref[...].astype(jnp.float32) - actual_ref[...].astype(jnp.float32)
    d2 = d * d
    n_groups = row_tile // SUBLANES

    def fold(x):
        # (row_tile, 128) -> (8, 128): pure VPU vreg adds (no XLU cross-lane).
        return x.reshape(n_groups, SUBLANES, LANES).sum(axis=0)

    if needs_mask:
        base = (c * tiles_per_split + t) * row_tile
        is_edge = base + row_tile > valid_rows   # scalar predicate

        @pl.when(jnp.logical_not(is_edge))
        def _():
            # Fully-valid interior tile: no iota/compare/select cost.
            out_ref[...] += fold(d2)

        @pl.when(is_edge)
        def _():
            # Partial last tile / clamped duplicate tiles: mask rows past the
            # end of the slab.  jnp.where is a true select, so garbage (even
            # NaN/Inf) in the out-of-range region cannot pollute the sum.
            row_idx = base + lax.broadcasted_iota(jnp.int32, d2.shape, 0)
            out_ref[...] += fold(jnp.where(row_idx < valid_rows, d2, 0.0))
    else:
        out_ref[...] += fold(d2)


def _rmse_pallas(pred, actual, *, row_tile_override=None):
    """Pallas streaming path.  `row_tile_override` is for testing only."""
    total_n = pred.size

    # Flatten (free reshape); keep native dtype so HBM traffic stays at the
    # input's width -- the f32 cast happens inside the kernel.
    pred_f = pred.reshape(-1)
    actual_f = actual.reshape(-1)

    rem = total_n % LANES
    if rem:
        # Only for sizes that are not a multiple of 128: tiny (<128 elem) pad
        # so the lane-dense reshape exists.  Padded zeros contribute 0.
        pad = LANES - rem
        pred_f = jnp.pad(pred_f, (0, pad))
        actual_f = jnp.pad(actual_f, (0, pad))

    rows = pred_f.size // LANES
    pred2d = pred_f.reshape(rows, LANES)
    actual2d = actual_f.reshape(rows, LANES)

    cfg = _chip_config()
    itemsize = max(jnp.dtype(pred.dtype).itemsize,
                   jnp.dtype(actual.dtype).itemsize)
    # Per-step HBM byte budget per input block; narrower dtypes get
    # proportionally more rows (bf16 -> 2x rows, int8/fp8 -> 4x rows).
    budget_rows = max(SUBLANES,
                      (cfg["block_bytes"] // (LANES * itemsize))
                      // SUBLANES * SUBLANES)
    row_tile = min(budget_rows, _round_up(rows, SUBLANES))
    if row_tile_override is not None:
        row_tile = _round_up(min(row_tile_override, row_tile), SUBLANES)

    n_blocks = pl.cdiv(rows, row_tile)
    num_splits = max(1, min(cfg["num_cores"], n_blocks))
    tiles_per_split = pl.cdiv(n_blocks, num_splits)
    # Masking is needed whenever the logical (splits x tiles x row_tile) row
    # space overshoots the real slab.
    needs_mask = (num_splits * tiles_per_split * row_tile) != rows
    last_block = n_blocks - 1

    def in_map(c, t):
        # Clamp so overshoot tiles re-read a valid block; their contribution
        # is masked to zero inside the kernel.
        return (jnp.minimum(c * tiles_per_split + t, last_block), 0)

    # Leading split axis: core-parallel only on genuinely multi-TC chips (v7x);
    # otherwise it is a trivial size-1 axis.
    if num_splits > 1:
        split_sem = getattr(pltpu, "CORE_PARALLEL", "parallel")
    else:
        split_sem = "arbitrary"

    cp_kwargs = dict(dimension_semantics=(split_sem, "arbitrary"))
    if cfg["vmem_limit"] is not None:
        cp_kwargs["vmem_limit_bytes"] = cfg["vmem_limit"]

    bytes_in = total_n * (jnp.dtype(pred.dtype).itemsize
                          + jnp.dtype(actual.dtype).itemsize)
    bytes_out = num_splits * SUBLANES * LANES * 4

    partials = pl.pallas_call(
        functools.partial(
            _rmse_partial_kernel,
            tiles_per_split=tiles_per_split,
            row_tile=row_tile,
            valid_rows=rows,
            needs_mask=needs_mask,
        ),
        out_shape=jax.ShapeDtypeStruct((num_splits * SUBLANES, LANES),
                                       jnp.float32),
        grid_spec=pltpu.PrefetchScalarGridSpec(
            num_scalar_prefetch=0,
            grid=(num_splits, tiles_per_split),
            in_specs=[
                pl.BlockSpec((row_tile, LANES), in_map),
                pl.BlockSpec((row_tile, LANES), in_map),
            ],
            out_specs=pl.BlockSpec((SUBLANES, LANES), lambda c, t: (c, 0)),
        ),
        compiler_params=pltpu.CompilerParams(**cp_kwargs),
        cost_estimate=pl.CostEstimate(
            flops=3 * total_n,
            transcendentals=0,
            bytes_accessed=bytes_in + bytes_out,
        ),
    )(pred2d, actual2d)

    # Tiny final cross-lane reduce (num_splits*8*128 floats) + sqrt in plain JAX.
    return jnp.sqrt(jnp.sum(partials) / jnp.float32(total_n))


def rmse_loss(pred, actual):
    assert pred.shape == actual.shape, "pred/actual must have identical shapes"
    total_n = pred.size
    if total_n == 0:
        # torch MSELoss on empty input yields NaN.
        return jnp.float32(jnp.nan)

    in_bytes = total_n * (jnp.dtype(pred.dtype).itemsize
                          + jnp.dtype(actual.dtype).itemsize)
    if in_bytes < FAST_PATH_BYTES:
        # Tiny-input fast path: plain XLA fusion beats pallas_call startup.
        d = pred.astype(jnp.float32) - actual.astype(jnp.float32)
        return jnp.sqrt(jnp.mean(d * d))
    return _rmse_pallas(pred, actual)


def _reference(pred, actual):
    p = pred.astype(jnp.float32)
    a = actual.astype(jnp.float32)
    return jnp.sqrt(jnp.mean(((p + 1.0) - (a + 1.0)) ** 2))


if __name__ == "__main__":
    key = jax.random.PRNGKey(0)
    k1, k2, k3, k4 = jax.random.split(key, 4)

    # Small NCHW-shaped synthetic inputs (RMSELoss has no parameters).
    pred = jax.random.normal(k1, (2, 4, 16, 16), dtype=jnp.float32)
    actual = jax.random.normal(k2, (2, 4, 16, 16), dtype=jnp.float32)

    # 1) Public entry point (tiny input -> fast path).
    loss = jax.block_until_ready(rmse_loss(pred, actual))
    ref = _reference(pred, actual)
    assert jnp.allclose(loss, ref, rtol=1e-5, atol=1e-6), (loss, ref)

    # 2) Force the Pallas path on the same input (single clean tile).
    loss_pk = jax.block_until_ready(_rmse_pallas(pred, actual))
    assert jnp.allclose(loss_pk, ref, rtol=1e-5, atol=1e-6), (loss_pk, ref)

    # 3) Ragged shape + tiny row-tile override: exercises multi-block
    #    accumulation and the gated edge-tile mask.
    pred_r = jax.random.normal(k3, (3, 5, 17, 13), dtype=jnp.float32)
    actual_r = jax.random.normal(k4, (3, 5, 17, 13), dtype=jnp.float32)
    loss_r = jax.block_until_ready(
        _rmse_pallas(pred_r, actual_r, row_tile_override=8))
    ref_r = _reference(pred_r, actual_r)
    assert jnp.allclose(loss_r, ref_r, rtol=1e-5, atol=1e-6), (loss_r, ref_r)

    print("KERNEL_OK")
</pallas_src>

<mosaic_0001>
module attributes {stable_mosaic.version = 11 : i64} {
  func.func @_rmse_partial_kernel(%arg0: i32, %arg1: i32, %arg2: memref<16x128xf32, #tpu.memory_space<vmem>>, %arg3: memref<16x128xf32, #tpu.memory_space<vmem>>, %arg4: memref<8x128xf32, #tpu.memory_space<vmem>>) attributes {dimension_semantics = [#tpu.dimension_semantics<arbitrary>, #tpu.dimension_semantics<arbitrary>], iteration_bounds = array<i64: 1, 1>, scalar_prefetch = 0 : i64, scratch_operands = 0 : i64, tpu.core_type = #tpu.core_type<tc>, window_params = [{transform_indices = @transform_0, window_bounds = array<i64: 16, 128>}, {transform_indices = @transform_1, window_bounds = array<i64: 16, 128>}, {transform_indices = @transform_2, window_bounds = array<i64: 8, 128>}]} {
    %c0_i32 = arith.constant 0 : i32
    %0 = arith.cmpi eq, %arg1, %c0_i32 : i32
    %1 = arith.extui %0 : i1 to i32
    %c0_i32_0 = arith.constant 0 : i32
    %2 = arith.cmpi ne, %1, %c0_i32_0 : i32
    scf.if %2 {
      %cst_8 = arith.constant 0.000000e+00 : f32
      %12 = vector.broadcast %cst_8 : f32 to vector<8x128xf32>
      %c0_9 = arith.constant 0 : index
      %c0_10 = arith.constant 0 : index
      %13 = vector.load %arg4[%c0_9, %c0_10] : memref<8x128xf32, #tpu.memory_space<vmem>>, vector<8x128xf32>
      tpu.vector_store %arg4[%c0_9, %c0_10], %12 {strides = array<i32>} : memref<8x128xf32, #tpu.memory_space<vmem>>, vector<8x128xf32>,
    } else {
    }
    %c0 = arith.constant 0 : index
    %c0_1 = arith.constant 0 : index
    %3 = vector.load %arg2[%c0, %c0_1] : memref<16x128xf32, #tpu.memory_space<vmem>>, vector<16x128xf32>
    %c0_2 = arith.constant 0 : index
    %c0_3 = arith.constant 0 : index
    %4 = vector.load %arg3[%c0_2, %c0_3] : memref<16x128xf32, #tpu.memory_space<vmem>>, vector<16x128xf32>
    %5 = arith.subf %3, %4 : vector<16x128xf32>
    %6 = arith.mulf %5, %5 : vector<16x128xf32>
    %c0_4 = arith.constant 0 : index
    %c0_5 = arith.constant 0 : index
    %7 = vector.load %arg4[%c0_4, %c0_5] : memref<8x128xf32, #tpu.memory_space<vmem>>, vector<8x128xf32>
    %8 = vector.shape_cast %6 : vector<16x128xf32> to vector<2x8x128xf32>
    %cst = arith.constant dense<0.000000e+00> : vector<8x128xf32>
    %9 = vector.multi_reduction <add>, %8, %cst [0] : vector<2x8x128xf32> to vector<8x128xf32>
    %10 = arith.addf %7, %9 : vector<8x128xf32>
    %c0_6 = arith.constant 0 : index
    %c0_7 = arith.constant 0 : index
    %11 = vector.load %arg4[%c0_6, %c0_7] : memref<8x128xf32, #tpu.memory_space<vmem>>, vector<8x128xf32>
    tpu.vector_store %arg4[%c0_6, %c0_7], %10 {strides = array<i32>} : memref<8x128xf32, #tpu.memory_space<vmem>>, vector<8x128xf32>,
    return
  }
  func.func @transform_0(%arg0: i32, %arg1: i32) -> (i32, i32) {
    %c1_i32 = arith.constant 1 : i32
    %0 = arith.muli %arg0, %c1_i32 : i32
    %1 = arith.addi %0, %arg1 : i32
    %c0_i32 = arith.constant 0 : i32
    %2 = arith.minsi %1, %c0_i32 : i32
    %c0_i32_0 = arith.constant 0 : i32
    %c0_i32_1 = arith.constant 0 : i32
    return %2, %c0_i32_0 : i32, i32
  }
  func.func @transform_1(%arg0: i32, %arg1: i32) -> (i32, i32) {
    %c1_i32 = arith.constant 1 : i32
    %0 = arith.muli %arg0, %c1_i32 : i32
    %1 = arith.addi %0, %arg1 : i32
    %c0_i32 = arith.constant 0 : i32
    %2 = arith.minsi %1, %c0_i32 : i32
    %c0_i32_0 = arith.constant 0 : i32
    %c0_i32_1 = arith.constant 0 : i32
    return %2, %c0_i32_0 : i32, i32
  }
  func.func @transform_2(%arg0: i32, %arg1: i32) -> (i32, i32) {
    %c0_i32 = arith.constant 0 : i32
    %c0_i32_0 = arith.constant 0 : i32
    return %arg0, %c0_i32 : i32, i32
  }
}

</mosaic_0001>

<llo_original>
// kernel: tpu_custom_call.1
$region0: #{tpu_custom_call.1}
  #allocation0 [shape = 'u32[]', space=smem, size = 0x4, offset = 0x4, fixed_abs, tag = 'smem constant byte address 0x4 - core index']
  #allocation1 [shape = 'u32[144,128]{1,0:T(1,128)}', space=vmem, size = 0x12000, scoped, tag = 'internal scratch']
  %s0 = inlined_call_operand.hbm [shape: f32[16,128], index: 0, kind: input, shape index: {}]
  %s1 = inlined_call_operand.hbm [shape: f32[16,128], index: 1, kind: input, shape index: {}]
  %s2 = inlined_call_operand.hbm [shape: f32[8,128], index: 2, kind: output, shape index: {}]
  %s3 = sld [smem:[#allocation0]]
  $region30: #{tpu_custom_call.1} parent=0
    _
  %s5 = ssub.s32 1, %s3
  %s6 = scalar_select 0, %s5, %s3
  $region1: #{tpu_custom_call.1} parent=0
    #allocation2 [shape = 'u8[8192]{0}', space=vmem, size = 0x2000, scoped, tag = 'input window, operand 0, single buffered']
    #allocation3 [shape = 's32[1]{0}', space=sflag, size = 0x4, scoped, tag = 'scoped memory for tpu_custom_call.1']
    #allocation4 [shape = 's32[1]{0}', space=sflag, size = 0x4, scoped, tag = 'scoped memory for tpu_custom_call.1']
    #allocation5 [shape = 'u8[8192]{0}', space=vmem, size = 0x2000, scoped, tag = 'input window, operand 1, single buffered']
    #allocation6 [shape = 's32[1]{0}', space=sflag, size = 0x4, scoped, tag = 'scoped memory for tpu_custom_call.1']
    #allocation7 [shape = 'u8[4096]{0}', space=vmem, size = 0x1000, scoped, tag = 'output window, operand 0, single buffered']
    %7 = vsyncpa [#allocation3], 0
    %8 = vsyncpa [#allocation6], 0
    %9 = vsyncpa [#allocation4], 0
    // Predicated region
    $region2: #{tpu_custom_call.1} parent=1 // pred_check
      _
    $region3: #{tpu_custom_call.1} parent=1 // pred_check_branch
      %11 = sbr.rel (0) target = $region5
    $region4: #{tpu_custom_call.1} parent=1 // pred_region
      %s12 = sadd.s32 0, 0
      %p13 = scmp.lt.s32.totalorder %s12, 0
      %s14 = scalar_select %p13, %s12, 0
      %s15 = smul.u32 2, %s14
      %s17 = ssub.s32 256, 256
      %18 = vsyncadd [#allocation3], %s17
      %s19 = smul.addr %s15, 128
      %s20 = scalar_lea.hbm %s0, %s19
      %s21 = sshll.u32 [#allocation2], 4
      %s22 = int_to_ptr.vmem [resolvable:$true] %s21
      %27 = dma.hbm_to_vmem [thread:$0]  %s20, 256, %s22, [#allocation3], 128, 128, 8
    $region5: #{tpu_custom_call.1} parent=1 // pred_fallthru
      _
    // Predicated region
    $region6: #{tpu_custom_call.1} parent=1 // pred_check
      _
    $region7: #{tpu_custom_call.1} parent=1 // pred_check_branch
      %29 = sbr.rel (0) target = $region9
    $region8: #{tpu_custom_call.1} parent=1 // pred_region
      %s30 = sadd.s32 0, 0
      %p31 = scmp.lt.s32.totalorder %s30, 0
      %s32 = scalar_select %p31, %s30, 0
      %s33 = smul.u32 2, %s32
      %s35 = ssub.s32 256, 256
      %36 = vsyncadd [#allocation6], %s35
      %s37 = smul.addr %s33, 128
      %s38 = scalar_lea.hbm %s1, %s37
      %s39 = sshll.u32 [#allocation5], 4
      %s40 = int_to_ptr.vmem [resolvable:$true] %s39
      %45 = dma.hbm_to_vmem [thread:$0]  %s38, 256, %s40, [#allocation6], 128, 128, 8
    $region9: #{tpu_custom_call.1} parent=1 // pred_fallthru
      _
    // Predicated region
    $region10: #{tpu_custom_call.1} parent=1 // pred_check
      _
    $region11: #{tpu_custom_call.1} parent=1 // pred_check_branch
      %47 = sbr.rel (0) target = $region13
    $region12: #{tpu_custom_call.1} parent=1 // pred_region
      %48 = dma.done [#allocation3], 256
    $region13: #{tpu_custom_call.1} parent=1 // pred_fallthru
      _
    // Predicated region
    $region14: #{tpu_custom_call.1} parent=1 // pred_check
      _
    $region15: #{tpu_custom_call.1} parent=1 // pred_check_branch
      %50 = sbr.rel (0) target = $region17
    $region16: #{tpu_custom_call.1} parent=1 // pred_region
      %51 = dma.done [#allocation6], 256
    $region17: #{tpu_custom_call.1} parent=1 // pred_fallthru
      _
    %s52 = sadd.s32 0, 0
    %p53 = scmp.lt.s32.totalorder %s52, 0
    %s54 = scalar_select %p53, %s52, 0
    %s55 = smul.u32 2, %s54
    %s56 = sadd.s32 0, 0
    %p57 = scmp.lt.s32.totalorder %s56, 0
    %s58 = scalar_select %p57, %s56, 0
    %s59 = smul.u32 2, %s58
    %p60 = scmp.eq.s32.totalorder 0, 0
    // Predicated region
    $region18: #{tpu_custom_call.1} parent=1 // pred_check
      %p61 = pneg %p60
    $region19: #{tpu_custom_call.1} parent=1 // pred_check_branch
      %63 = sbr.rel (%p61) target = $region21
    $region20: #{tpu_custom_call.1} parent=1 // pred_region
      %64 = vst [vmem:[#allocation7] sm:$0xff] 0.0
    $region21: #{tpu_custom_call.1} parent=1 // pred_fallthru
      _
    %v65 = vld [vmem:[#allocation2] sm:$0xff]
    %v66 = vld [vmem:[#allocation2 + $0x8] sm:$0xff]
    %v67 = vld [vmem:[#allocation5] sm:$0xff]
    %v68 = vld [vmem:[#allocation5 + $0x8] sm:$0xff]
    %v69 = vsub.f32 %v65, %v67
    %v70 = vsub.f32 %v66, %v68
    %v71 = vmul.f32 %v69, %v69
    %v72 = vmul.f32 %v70, %v70
    %v73 = vld [vmem:[#allocation7] sm:$0xff]
    %v74 = vadd.f32 %v71, %v72
    %v75 = vadd.f32 %v73, %v74
    %76 = vst [vmem:[#allocation7] sm:$0xff] %v75
    // Predicated region
    $region22: #{tpu_custom_call.1} parent=1 // pred_check
      _
    $region23: #{tpu_custom_call.1} parent=1 // pred_check_branch
      %78 = sbr.rel (0) target = $region25
    $region24: #{tpu_custom_call.1} parent=1 // pred_region
      %s80 = ssub.s32 128, 128
      %81 = vsyncadd [#allocation4], %s80
      %s83 = sshll.u32 [#allocation7], 4
      %s84 = int_to_ptr.vmem [resolvable:$true] %s83
      %86 = dma.vmem_to_hbm [thread:$0]  %s84, 128, %s2, [#allocation4]
    $region25: #{tpu_custom_call.1} parent=1 // pred_fallthru
      _
    // Predicated region
    $region26: #{tpu_custom_call.1} parent=1 // pred_check
      _
    $region27: #{tpu_custom_call.1} parent=1 // pred_check_branch
      %88 = sbr.rel (0) target = $region29
    $region28: #{tpu_custom_call.1} parent=1 // pred_region
      %89 = dma.done [#allocation4], 128
    $region29: #{tpu_custom_call.1} parent=1 // pred_fallthru
      _
    %90 = vsyncpa [#allocation3], 1
    %91 = vsyncpa [#allocation6], 1
    %92 = vsyncpa [#allocation4], 1

</llo_original>
